<compile_context>
chip_gen: v6e
topology: v6e:2x2x1
jax: 0.10.0
libtpu: 0.0.40
codegen_flags: <defaults>
</compile_context>

<pallas_src>
import jax
import jax.numpy as jnp
from jax.experimental import pallas as pl
from jax.experimental.pallas import tpu as pltpu

HIDDEN = 768            # BERT hidden size
MID = 128               # classifier hidden
NUM_CLASSES = 2
LANE = 128              # TPU lane width
STRUCT_PAD = 128        # struct features zero-padded to one full lane tile
STRUCT_FEAT_DIM = 16
DEFAULT_TILE_B = 4096   # rows per grid step (upper bound; clamped per-call)
VMEM_LIMIT_BYTES = 32 * 1024 * 1024


def _round_up(x, m):
    return ((x + m - 1) // m) * m


def classifier_kernel(cls_ref, sf_ref, w1c_ref, w1s_ref, b1_ref, w2_ref, b2_ref, o_ref):
    """h = cls@W1_cls + sf@W1_sf + b1 -> ReLU -> (Dropout=identity) -> h@W2pad + b2pad."""
    h = jnp.dot(cls_ref[...], w1c_ref[...], preferred_element_type=jnp.float32)
    h += jnp.dot(sf_ref[...], w1s_ref[...], preferred_element_type=jnp.float32)
    h = jnp.maximum(h + b1_ref[...], 0.0)                       # (tile_b, 128) f32
    # nn.Dropout(0.3): identity in eval mode.
    out = jnp.dot(h.astype(w2_ref.dtype), w2_ref[...],
                  preferred_element_type=jnp.float32)
    o_ref[...] = (out + b2_ref[...]).astype(o_ref.dtype)        # lane-dense (tile_b, 128) bf16


def prepare_head_params(w1, b1, w2, b2):
    """One-time weight repack: split W1, lane-pad W2/b2, cast to bf16 for the MXU."""
    F = w1.shape[0] - HIDDEN
    w1_cls = w1[:HIDDEN, :].astype(jnp.bfloat16)                          # (768, 128)
    w1_sf = jnp.zeros((STRUCT_PAD, MID), jnp.bfloat16).at[:F, :].set(
        w1[HIDDEN:, :].astype(jnp.bfloat16))                              # (128, 128)
    b1_2d = b1.reshape(1, MID).astype(jnp.float32)                        # (1, 128)
    w2_pad = jnp.zeros((MID, LANE), jnp.bfloat16).at[:, :NUM_CLASSES].set(
        w2.astype(jnp.bfloat16))                                          # (128, 128)
    b2_pad = jnp.zeros((1, LANE), jnp.float32).at[:, :NUM_CLASSES].set(
        b2.reshape(1, NUM_CLASSES).astype(jnp.float32))                   # (1, 128)
    return {"w1_cls": w1_cls, "w1_sf": w1_sf, "b1": b1_2d,
            "w2": w2_pad, "b2": b2_pad}


def classifier_head(cls_token, struct_feats, head, *, tile_b=DEFAULT_TILE_B):
    """cls_token: (B, 768) bf16, struct_feats: (B, F) f32  ->  logits (B, 2) f32."""
    B = cls_token.shape[0]
    F = struct_feats.shape[1]

    # --- batch tiling: multiple of 16 (bf16 sublanes); >=2 grid steps when possible.
    tile_b = max(16, min(tile_b, _round_up(pl.cdiv(B, 2), 16)))
    grid_b = pl.cdiv(B, tile_b)
    b_pad = grid_b * tile_b

    # --- [CLS] stream stays bf16; only row-padded to a whole number of tiles.
    cls = cls_token.astype(jnp.bfloat16)
    if b_pad != B:
        cls = jnp.pad(cls, ((0, b_pad - B), (0, 0)))

    # --- struct features: tiny lane-padded bf16 block (256 B/row).
    sf = jnp.zeros((b_pad, STRUCT_PAD), jnp.bfloat16).at[:B, :F].set(
        struct_feats.astype(jnp.bfloat16))

    out = pl.pallas_call(
        classifier_kernel,
        out_shape=jax.ShapeDtypeStruct((b_pad, LANE), jnp.bfloat16),
        grid_spec=pltpu.PrefetchScalarGridSpec(
            num_scalar_prefetch=0,
            grid=(grid_b,),
            in_specs=[
                pl.BlockSpec((tile_b, HIDDEN), lambda i: (i, 0)),       # cls activations
                pl.BlockSpec((tile_b, STRUCT_PAD), lambda i: (i, 0)),   # struct (padded)
                pl.BlockSpec((HIDDEN, MID), lambda i: (0, 0)),          # W1_cls (resident)
                pl.BlockSpec((STRUCT_PAD, MID), lambda i: (0, 0)),      # W1_sf (resident)
                pl.BlockSpec((1, MID), lambda i: (0, 0)),               # b1
                pl.BlockSpec((MID, LANE), lambda i: (0, 0)),            # W2 (padded)
                pl.BlockSpec((1, LANE), lambda i: (0, 0)),              # b2 (padded)
            ],
            out_specs=pl.BlockSpec((tile_b, LANE), lambda i: (i, 0)),
        ),
        compiler_params=pltpu.CompilerParams(
            dimension_semantics=("parallel",),
            vmem_limit_bytes=VMEM_LIMIT_BYTES),
    )(cls, sf, head["w1_cls"], head["w1_sf"], head["b1"], head["w2"], head["b2"])

    return out[:B, :NUM_CLASSES].astype(jnp.float32)


def hybrid_model_forward(params, input_ids, attention_mask, struct_feats):
    """Mirrors HybridModel.forward (BERT encoder stubbed — see TODO at top)."""
    # attention_mask does not change the [CLS] slice of this stub; kept for API parity.
    del attention_mask
    # Gather ONLY the [CLS] row (bf16 table -> bf16 (B, 768) stream).
    cls_token = params["embedding"][input_ids[:, 0]]
    return classifier_head(cls_token, struct_feats, params["head"])


def reference_forward(params, input_ids, struct_feats):
    """Pure-JAX f32 reference of the (stubbed-BERT) forward pass."""
    cls = params["embedding"][input_ids[:, 0]].astype(jnp.float32)
    combined = jnp.concatenate([cls, struct_feats], axis=1)
    h = jnp.maximum(combined @ params["w1"] + params["b1"], 0.0)
    return h @ params["w2"] + params["b2"]


def init_params(key, vocab_size, struct_feat_dim):
    k_emb, k_w1, k_b1, k_w2, k_b2 = jax.random.split(key, 5)
    w1 = jax.random.normal(k_w1, (HIDDEN + struct_feat_dim, MID), jnp.float32) * 0.02
    b1 = jax.random.normal(k_b1, (MID,), jnp.float32) * 0.02
    w2 = jax.random.normal(k_w2, (MID, NUM_CLASSES), jnp.float32) * 0.02
    b2 = jax.random.normal(k_b2, (NUM_CLASSES,), jnp.float32) * 0.02
    emb = (jax.random.normal(k_emb, (vocab_size, HIDDEN), jnp.float32) * 0.02
           ).astype(jnp.bfloat16)
    return {
        "embedding": emb,                 # stored bf16: gather emits bf16 directly
        "w1": w1, "b1": b1, "w2": w2, "b2": b2,          # raw (for reference)
        "head": prepare_head_params(w1, b1, w2, b2),     # one-time kernel repack
    }


if __name__ == "__main__":
    key = jax.random.PRNGKey(0)
    k_params, k_ids, k_sf = jax.random.split(key, 3)

    B, S, VOCAB = 2, 8, 100
    params = init_params(k_params, VOCAB, STRUCT_FEAT_DIM)

    input_ids = jax.random.randint(k_ids, (B, S), 0, VOCAB, dtype=jnp.int32)
    attention_mask = jnp.ones((B, S), dtype=jnp.int32)
    struct_feats = jax.random.normal(k_sf, (B, STRUCT_FEAT_DIM), jnp.float32)

    logits = hybrid_model_forward(params, input_ids, attention_mask, struct_feats)
    jax.block_until_ready(logits)

    assert logits.shape == (B, NUM_CLASSES) and logits.dtype == jnp.float32

    # Loose check vs f32 reference (kernel uses bf16 MXU inputs/outputs, f32 accumulation).
    ref = reference_forward(params, input_ids, struct_feats)
    max_err = float(jnp.max(jnp.abs(logits - ref)))
    assert max_err < 5e-3, f"max |err| = {max_err}"

    print("KERNEL_OK")
</pallas_src>

<mosaic_0001>
module attributes {stable_mosaic.version = 11 : i64} {
  func.func @classifier_kernel(%arg0: i32, %arg1: memref<16x768xbf16, #tpu.memory_space<vmem>>, %arg2: memref<16x128xbf16, #tpu.memory_space<vmem>>, %arg3: memref<768x128xbf16, #tpu.memory_space<vmem>>, %arg4: memref<128x128xbf16, #tpu.memory_space<vmem>>, %arg5: memref<1x128xf32, #tpu.memory_space<vmem>>, %arg6: memref<128x128xbf16, #tpu.memory_space<vmem>>, %arg7: memref<1x128xf32, #tpu.memory_space<vmem>>, %arg8: memref<16x128xbf16, #tpu.memory_space<vmem>>) attributes {dimension_semantics = [#tpu.dimension_semantics<parallel>], iteration_bounds = array<i64: 1>, scalar_prefetch = 0 : i64, scratch_operands = 0 : i64, tpu.core_type = #tpu.core_type<tc>, window_params = [{transform_indices = @transform_0, window_bounds = array<i64: 16, 768>}, {transform_indices = @transform_1, window_bounds = array<i64: 16, 128>}, {pipeline_mode = #tpu.pipeline_mode<synchronous>, transform_indices = @transform_2, window_bounds = array<i64: 768, 128>}, {pipeline_mode = #tpu.pipeline_mode<synchronous>, transform_indices = @transform_3, window_bounds = array<i64: 128, 128>}, {pipeline_mode = #tpu.pipeline_mode<synchronous>, transform_indices = @transform_4, window_bounds = array<i64: 1, 128>}, {pipeline_mode = #tpu.pipeline_mode<synchronous>, transform_indices = @transform_5, window_bounds = array<i64: 128, 128>}, {pipeline_mode = #tpu.pipeline_mode<synchronous>, transform_indices = @transform_6, window_bounds = array<i64: 1, 128>}, {transform_indices = @transform_7, window_bounds = array<i64: 16, 128>}]} {
    %c0 = arith.constant 0 : index
    %c0_0 = arith.constant 0 : index
    %0 = vector.load %arg1[%c0, %c0_0] : memref<16x768xbf16, #tpu.memory_space<vmem>>, vector<16x768xbf16>
    %c0_1 = arith.constant 0 : index
    %c0_2 = arith.constant 0 : index
    %1 = vector.load %arg3[%c0_1, %c0_2] : memref<768x128xbf16, #tpu.memory_space<vmem>>, vector<768x128xbf16>
    %cst = arith.constant dense<0.000000e+00> : vector<16x128xf32>
    %2 = tpu.matmul %0, %1, %cst {dimension_numbers = #tpu.dot_dimension_numbers<[1], [0], [0], [1], [0, 0, 1, 1], [], []>} : vector<16x768xbf16>, vector<768x128xbf16>, vector<16x128xf32> -> vector<16x128xf32>
    %c0_3 = arith.constant 0 : index
    %c0_4 = arith.constant 0 : index
    %3 = vector.load %arg2[%c0_3, %c0_4] : memref<16x128xbf16, #tpu.memory_space<vmem>>, vector<16x128xbf16>
    %c0_5 = arith.constant 0 : index
    %c0_6 = arith.constant 0 : index
    %4 = vector.load %arg4[%c0_5, %c0_6] : memref<128x128xbf16, #tpu.memory_space<vmem>>, vector<128x128xbf16>
    %cst_7 = arith.constant dense<0.000000e+00> : vector<16x128xf32>
    %5 = tpu.matmul %3, %4, %cst_7 {dimension_numbers = #tpu.dot_dimension_numbers<[1], [0], [0], [1], [0, 0, 1, 1], [], []>} : vector<16x128xbf16>, vector<128x128xbf16>, vector<16x128xf32> -> vector<16x128xf32>
    %6 = arith.addf %2, %5 : vector<16x128xf32>
    %c0_8 = arith.constant 0 : index
    %c0_9 = arith.constant 0 : index
    %7 = vector.load %arg5[%c0_8, %c0_9] : memref<1x128xf32, #tpu.memory_space<vmem>>, vector<1x128xf32>
    %8 = vector.broadcast %7 : vector<1x128xf32> to vector<16x128xf32>
    %9 = arith.addf %6, %8 : vector<16x128xf32>
    %cst_10 = arith.constant 0.000000e+00 : f32
    %10 = vector.broadcast %cst_10 : f32 to vector<16x128xf32>
    %11 = arith.maximumf %9, %10 : vector<16x128xf32>
    %12 = arith.truncf %11 : vector<16x128xf32> to vector<16x128xbf16>
    %c0_11 = arith.constant 0 : index
    %c0_12 = arith.constant 0 : index
    %13 = vector.load %arg6[%c0_11, %c0_12] : memref<128x128xbf16, #tpu.memory_space<vmem>>, vector<128x128xbf16>
    %cst_13 = arith.constant dense<0.000000e+00> : vector<16x128xf32>
    %14 = tpu.matmul %12, %13, %cst_13 {dimension_numbers = #tpu.dot_dimension_numbers<[1], [0], [0], [1], [0, 0, 1, 1], [], []>} : vector<16x128xbf16>, vector<128x128xbf16>, vector<16x128xf32> -> vector<16x128xf32>
    %c0_14 = arith.constant 0 : index
    %c0_15 = arith.constant 0 : index
    %15 = vector.load %arg7[%c0_14, %c0_15] : memref<1x128xf32, #tpu.memory_space<vmem>>, vector<1x128xf32>
    %16 = vector.broadcast %15 : vector<1x128xf32> to vector<16x128xf32>
    %17 = arith.addf %14, %16 : vector<16x128xf32>
    %18 = arith.truncf %17 : vector<16x128xf32> to vector<16x128xbf16>
    %c0_16 = arith.constant 0 : index
    %c0_17 = arith.constant 0 : index
    %19 = vector.load %arg8[%c0_16, %c0_17] : memref<16x128xbf16, #tpu.memory_space<vmem>>, vector<16x128xbf16>
    tpu.vector_store %arg8[%c0_16, %c0_17], %18 {strides = array<i32>} : memref<16x128xbf16, #tpu.memory_space<vmem>>, vector<16x128xbf16>,
    return
  }
  func.func @transform_0(%arg0: i32) -> (i32, i32) {
    %c0_i32 = arith.constant 0 : i32
    %c0_i32_0 = arith.constant 0 : i32
    return %arg0, %c0_i32 : i32, i32
  }
  func.func @transform_1(%arg0: i32) -> (i32, i32) {
    %c0_i32 = arith.constant 0 : i32
    %c0_i32_0 = arith.constant 0 : i32
    return %arg0, %c0_i32 : i32, i32
  }
  func.func @transform_2(%arg0: i32) -> (i32, i32) {
    %c0_i32 = arith.constant 0 : i32
    %c0_i32_0 = arith.constant 0 : i32
    %c0_i32_1 = arith.constant 0 : i32
    return %c0_i32, %c0_i32_0 : i32, i32
  }
  func.func @transform_3(%arg0: i32) -> (i32, i32) {
    %c0_i32 = arith.constant 0 : i32
    %c0_i32_0 = arith.constant 0 : i32
    %c0_i32_1 = arith.constant 0 : i32
    return %c0_i32, %c0_i32_0 : i32, i32
  }
  func.func @transform_4(%arg0: i32) -> (i32, i32) {
    %c0_i32 = arith.constant 0 : i32
    %c0_i32_0 = arith.constant 0 : i32
    %c0_i32_1 = arith.constant 0 : i32
    return %c0_i32, %c0_i32_0 : i32, i32
  }
  func.func @transform_5(%arg0: i32) -> (i32, i32) {
    %c0_i32 = arith.constant 0 : i32
    %c0_i32_0 = arith.constant 0 : i32
    %c0_i32_1 = arith.constant 0 : i32
    return %c0_i32, %c0_i32_0 : i32, i32
  }
  func.func @transform_6(%arg0: i32) -> (i32, i32) {
    %c0_i32 = arith.constant 0 : i32
    %c0_i32_0 = arith.constant 0 : i32
    %c0_i32_1 = arith.constant 0 : i32
    return %c0_i32, %c0_i32_0 : i32, i32
  }
  func.func @transform_7(%arg0: i32) -> (i32, i32) {
    %c0_i32 = arith.constant 0 : i32
    %c0_i32_0 = arith.constant 0 : i32
    return %arg0, %c0_i32 : i32, i32
  }
}

</mosaic_0001>

<llo_original>
// kernel: tpu_custom_call.1
$region0: #{tpu_custom_call.1}
  #allocation0 [shape = 'u32[]', space=smem, size = 0x4, offset = 0x4, fixed_abs, tag = 'smem constant byte address 0x4 - core index']
  #allocation1 [shape = 'u32[144,128]{1,0:T(1,128)}', space=vmem, size = 0x12000, scoped, tag = 'internal scratch']
  %s0 = inlined_call_operand.hbm [shape: bf16[16,768], index: 0, kind: input, shape index: {}]
  %s1 = inlined_call_operand.hbm [shape: bf16[16,128], index: 1, kind: input, shape index: {}]
  %s2 = inlined_call_operand.hbm [shape: bf16[768,128], index: 2, kind: input, shape index: {}]
  %s3 = inlined_call_operand.hbm [shape: bf16[128,128], index: 3, kind: input, shape index: {}]
  %s4 = inlined_call_operand.vmem [shape: f32[1,128], index: 4, kind: input, shape index: {}]
  %s5 = inlined_call_operand.hbm [shape: bf16[128,128], index: 5, kind: input, shape index: {}]
  %s6 = inlined_call_operand.vmem [shape: f32[1,128], index: 6, kind: input, shape index: {}]
  %s7 = inlined_call_operand.hbm [shape: bf16[16,128], index: 7, kind: output, shape index: {}]
  %s8 = sld [smem:[#allocation0]]
  $region58: #{tpu_custom_call.1} parent=0
    _
  %s10 = ssub.s32 1, %s8
  %s11 = scalar_select 0, %s10, %s8
  $region1: #{tpu_custom_call.1} parent=0
    #allocation2 [shape = 'u8[24576]{0}', space=vmem, size = 0x6000, scoped, tag = 'input window, operand 0, single buffered']
    #allocation3 [shape = 's32[1]{0}', space=sflag, size = 0x4, scoped, tag = 'scoped memory for tpu_custom_call.1']
    #allocation4 [shape = 's32[1]{0}', space=sflag, size = 0x4, scoped, tag = 'scoped memory for tpu_custom_call.1']
    #allocation5 [shape = 'u8[4096]{0}', space=vmem, size = 0x1000, scoped, tag = 'input window, operand 1, single buffered']
    #allocation6 [shape = 's32[1]{0}', space=sflag, size = 0x4, scoped, tag = 'scoped memory for tpu_custom_call.1']
    #allocation7 [shape = 'u8[196608]{0}', space=vmem, size = 0x30000, scoped, tag = 'input window, operand 2, single buffered']
    #allocation8 [shape = 'u8[32768]{0}', space=vmem, size = 0x8000, scoped, tag = 'input window, operand 3, single buffered']
    #allocation9 [shape = 's32[1]{0}', space=sflag, size = 0x4, scoped, tag = 'scoped memory for tpu_custom_call.1']
    #allocation10 [shape = 'u8[32768]{0}', space=vmem, size = 0x8000, scoped, tag = 'input window, operand 5, single buffered']
    #allocation11 [shape = 'u8[4096]{0}', space=vmem, size = 0x1000, scoped, tag = 'output window, operand 0, single buffered']
    %12 = vsyncpa [#allocation3], 0
    %13 = vsyncpa [#allocation6], 0
    %14 = vsyncpa [#allocation9], 0
    %15 = vsyncpa [#allocation4], 0
    // Predicated region
    $region2: #{tpu_custom_call.1} parent=1 // pred_check
      _
    $region3: #{tpu_custom_call.1} parent=1 // pred_check_branch
      %17 = sbr.rel (0) target = $region5
    $region4: #{tpu_custom_call.1} parent=1 // pred_region
      %s19 = ssub.s32 768, 768
      %20 = vsyncadd [#allocation3], %s19
      %s21 = sshll.u32 [#allocation2], 4
      %s22 = int_to_ptr.vmem [resolvable:$true] %s21
      %27 = dma.hbm_to_vmem [thread:$0]  %s0, 768, %s22, [#allocation3], 384, 384, 24
    $region5: #{tpu_custom_call.1} parent=1 // pred_fallthru
      _
    // Predicated region
    $region6: #{tpu_custom_call.1} parent=1 // pred_check
      _
    $region7: #{tpu_custom_call.1} parent=1 // pred_check_branch
      %29 = sbr.rel (0) target = $region9
    $region8: #{tpu_custom_call.1} parent=1 // pred_region
      %s31 = ssub.s32 128, 128
      %32 = vsyncadd [#allocation6], %s31
      %s33 = sshll.u32 [#allocation5], 4
      %s34 = int_to_ptr.vmem [resolvable:$true] %s33
      %39 = dma.hbm_to_vmem [thread:$0]  %s1, 128, %s34, [#allocation6], 64, 64, 4
    $region9: #{tpu_custom_call.1} parent=1 // pred_fallthru
      _
    // Predicated region
    $region10: #{tpu_custom_call.1} parent=1 // pred_check
      _
    $region11: #{tpu_custom_call.1} parent=1 // pred_check_branch
      %41 = sbr.rel (0) target = $region13
    $region12: #{tpu_custom_call.1} parent=1 // pred_region
      %s43 = ssub.s32 6144, 6144
      %44 = vsyncadd [#allocation6], %s43
      %s45 = sshll.u32 [#allocation7], 4
      %s46 = int_to_ptr.vmem [resolvable:$true] %s45
      %51 = dma.hbm_to_vmem [thread:$0]  %s2, 6144, %s46, [#allocation6], 64, 64, 4
    $region13: #{tpu_custom_call.1} parent=1 // pred_fallthru
      _
    // Predicated region
    $region14: #{tpu_custom_call.1} parent=1 // pred_check
      _
    $region15: #{tpu_custom_call.1} parent=1 // pred_check_branch
      %53 = sbr.rel (0) target = $region17
    $region16: #{tpu_custom_call.1} parent=1 // pred_region
      %s55 = ssub.s32 1024, 1024
      %56 = vsyncadd [#allocation9], %s55
      %s57 = sshll.u32 [#allocation8], 4
      %s58 = int_to_ptr.vmem [resolvable:$true] %s57
      %63 = dma.hbm_to_vmem [thread:$0]  %s3, 1024, %s58, [#allocation9], 64, 64, 4
    $region17: #{tpu_custom_call.1} parent=1 // pred_fallthru
      _
    // Predicated region
    $region18: #{tpu_custom_call.1} parent=1 // pred_check
      _
    $region19: #{tpu_custom_call.1} parent=1 // pred_check_branch
      %65 = sbr.rel (0) target = $region21
    $region20: #{tpu_custom_call.1} parent=1 // pred_region
      _
    $region21: #{tpu_custom_call.1} parent=1 // pred_fallthru
      _
    // Predicated region
    $region22: #{tpu_custom_call.1} parent=1 // pred_check
      _
    $region23: #{tpu_custom_call.1} parent=1 // pred_check_branch
      %67 = sbr.rel (0) target = $region25
    $region24: #{tpu_custom_call.1} parent=1 // pred_region
      %s69 = ssub.s32 1024, 1024
      %70 = vsyncadd [#allocation9], %s69
      %s71 = sshll.u32 [#allocation10], 4
      %s72 = int_to_ptr.vmem [resolvable:$true] %s71
      %77 = dma.hbm_to_vmem [thread:$0]  %s5, 1024, %s72, [#allocation9], 64, 64, 4
    $region25: #{tpu_custom_call.1} parent=1 // pred_fallthru
      _
    // Predicated region
    $region26: #{tpu_custom_call.1} parent=1 // pred_check
      _
    $region27: #{tpu_custom_call.1} parent=1 // pred_check_branch
      %79 = sbr.rel (0) target = $region29
    $region28: #{tpu_custom_call.1} parent=1 // pred_region
      _
    $region29: #{tpu_custom_call.1} parent=1 // pred_fallthru
      _
    // Predicated region
    $region30: #{tpu_custom_call.1} parent=1 // pred_check
      _
    $region31: #{tpu_custom_call.1} parent=1 // pred_check_branch
      %81 = sbr.rel (0) target = $region33
    $region32: #{tpu_custom_call.1} parent=1 // pred_region
      %82 = dma.done [#allocation3], 768
    $region33: #{tpu_custom_call.1} parent=1 // pred_fallthru
      _
    // Predicated region
    $region34: #{tpu_custom_call.1} parent=1 // pred_check
      _
    $region35: #{tpu_custom_call.1} parent=1 // pred_check_branch
      %84 = sbr.rel (0) target = $region37
    $region36: #{tpu_custom_call.1} parent=1 // pred_region
      %85 = dma.done [#allocation6], 128
    $region37: #{tpu_custom_call.1} parent=1 // pred_fallthru
      _
    // Predicated region
    $region38: #{tpu_custom_call.1} parent=1 // pred_check
      _
    $region39: #{tpu_custom_call.1} parent=1 // pred_check_branch
      %87 = sbr.rel (0) target = $region41
    $region40: #{tpu_custom_call.1} parent=1 // pred_region
      %88 = dma.done [#allocation6], 6144
    $region41: #{tpu_custom_call.1} parent=1 // pred_fallthru
      _
    // Predicated region
    $region42: #{tpu_custom_call.1} parent=1 // pred_check
      _
    $region43: #{tpu_custom_call.1} parent=1 // pred_check_branch
      %90 = sbr.rel (0) target = $region45
    $region44: #{tpu_custom_call.1} parent=1 // pred_region
      %91 = dma.done [#allocation9], 1024
    $region45: #{tpu_custom_call.1} parent=1 // pred_fallthru
      _
    // Predicated region
    $region46: #{tpu_custom_call.1} parent=1 // pred_check
      _
    $region47: #{tpu_custom_call.1} parent=1 // pred_check_branch
      %93 = sbr.rel (0) target = $region49
    $region48: #{tpu_custom_call.1} parent=1 // pred_region
      %94 = dma.done [#allocation9], 1024
    $region49: #{tpu_custom_call.1} parent=1 // pred_fallthru
      _
    %v96 = vld [vmem:[#allocation2] sm:$0xff]
    %v97 = vld [vmem:[#allocation2 + $0x8] sm:$0xff]
    %v98 = vld [vmem:[#allocation2 + $0x10] sm:$0xff]
    %v99 = vld [vmem:[#allocation2 + $0x18] sm:$0xff]
    %v100 = vld [vmem:[#allocation2 + $0x20] sm:$0xff]
    %v101 = vld [vmem:[#allocation2 + $0x28] sm:$0xff]
    %v102 = vld [vmem:[#allocation7] sm:$0xf]
    %v103 = vld [vmem:[#allocation7 + $0x4] sm:$0xf]
    %v104 = vld [vmem:[#allocation7 + $0x8] sm:$0xf]
    %v105 = vld [vmem:[#allocation7 + $0xc] sm:$0xf]
    %v106 = vld [vmem:[#allocation7 + $0x10] sm:$0xf]
    %v107 = vld [vmem:[#allocation7 + $0x14] sm:$0xf]
    %v108 = vld [vmem:[#allocation7 + $0x18] sm:$0xf]
    %v109 = vld [vmem:[#allocation7 + $0x1c] sm:$0xf]
    %v110 = vld [vmem:[#allocation7 + $0x20] sm:$0xf]
    %v111 = vld [vmem:[#allocation7 + $0x24] sm:$0xf]
    %v112 = vld [vmem:[#allocation7 + $0x28] sm:$0xf]
    %v113 = vld [vmem:[#allocation7 + $0x2c] sm:$0xf]
    %v114 = vld [vmem:[#allocation7 + $0x30] sm:$0xf]
    %v115 = vld [vmem:[#allocation7 + $0x34] sm:$0xf]
    %v116 = vld [vmem:[#allocation7 + $0x38] sm:$0xf]
    %v117 = vld [vmem:[#allocation7 + $0x3c] sm:$0xf]
    %v118 = vld [vmem:[#allocation7 + $0x40] sm:$0xf]
    %v119 = vld [vmem:[#allocation7 + $0x44] sm:$0xf]
    %v120 = vld [vmem:[#allocation7 + $0x48] sm:$0xf]
    %v121 = vld [vmem:[#allocation7 + $0x4c] sm:$0xf]
    %v122 = vld [vmem:[#allocation7 + $0x50] sm:$0xf]
    %v123 = vld [vmem:[#allocation7 + $0x54] sm:$0xf]
    %v124 = vld [vmem:[#allocation7 + $0x58] sm:$0xf]
    %v125 = vld [vmem:[#allocation7 + $0x5c] sm:$0xf]
    %v126 = vld [vmem:[#allocation7 + $0x60] sm:$0xf]
    %v127 = vld [vmem:[#allocation7 + $0x64] sm:$0xf]
    %v128 = vld [vmem:[#allocation7 + $0x68] sm:$0xf]
    %v129 = vld [vmem:[#allocation7 + $0x6c] sm:$0xf]
    %v130 = vld [vmem:[#allocation7 + $0x70] sm:$0xf]
    %v131 = vld [vmem:[#allocation7 + $0x74] sm:$0xf]
    %v132 = vld [vmem:[#allocation7 + $0x78] sm:$0xf]
    %v133 = vld [vmem:[#allocation7 + $0x7c] sm:$0xf]
    %v134 = vld [vmem:[#allocation7 + $0x80] sm:$0xf]
    %v135 = vld [vmem:[#allocation7 + $0x84] sm:$0xf]
    %v136 = vld [vmem:[#allocation7 + $0x88] sm:$0xf]
    %v137 = vld [vmem:[#allocation7 + $0x8c] sm:$0xf]
    %v138 = vld [vmem:[#allocation7 + $0x90] sm:$0xf]
    %v139 = vld [vmem:[#allocation7 + $0x94] sm:$0xf]
    %v140 = vld [vmem:[#allocation7 + $0x98] sm:$0xf]
    %v141 = vld [vmem:[#allocation7 + $0x9c] sm:$0xf]
    %v142 = vld [vmem:[#allocation7 + $0xa0] sm:$0xf]
    %v143 = vld [vmem:[#allocation7 + $0xa4] sm:$0xf]
    %v144 = vld [vmem:[#allocation7 + $0xa8] sm:$0xf]
    %v145 = vld [vmem:[#allocation7 + $0xac] sm:$0xf]
    %v146 = vld [vmem:[#allocation7 + $0xb0] sm:$0xf]
    %v147 = vld [vmem:[#allocation7 + $0xb4] sm:$0xf]
    %v148 = vld [vmem:[#allocation7 + $0xb8] sm:$0xf]
    %v149 = vld [vmem:[#allocation7 + $0xbc] sm:$0xf]
    %v150 = vld [vmem:[#allocation7 + $0xc0] sm:$0xf]
    %v151 = vld [vmem:[#allocation7 + $0xc4] sm:$0xf]
    %v152 = vld [vmem:[#allocation7 + $0xc8] sm:$0xf]
    %v153 = vld [vmem:[#allocation7 + $0xcc] sm:$0xf]
    %v154 = vld [vmem:[#allocation7 + $0xd0] sm:$0xf]
    %v155 = vld [vmem:[#allocation7 + $0xd4] sm:$0xf]
    %v156 = vld [vmem:[#allocation7 + $0xd8] sm:$0xf]
    %v157 = vld [vmem:[#allocation7 + $0xdc] sm:$0xf]
    %v158 = vld [vmem:[#allocation7 + $0xe0] sm:$0xf]
    %v159 = vld [vmem:[#allocation7 + $0xe4] sm:$0xf]
    %v160 = vld [vmem:[#allocation7 + $0xe8] sm:$0xf]
    %v161 = vld [vmem:[#allocation7 + $0xec] sm:$0xf]
    %v162 = vld [vmem:[#allocation7 + $0xf0] sm:$0xf]
    %v163 = vld [vmem:[#allocation7 + $0xf4] sm:$0xf]
    %v164 = vld [vmem:[#allocation7 + $0xf8] sm:$0xf]
    %v165 = vld [vmem:[#allocation7 + $0xfc] sm:$0xf]
    %v166 = vld [vmem:[#allocation7 + $0x100] sm:$0xf]
    %v167 = vld [vmem:[#allocation7 + $0x104] sm:$0xf]
    %v168 = vld [vmem:[#allocation7 + $0x108] sm:$0xf]
    %v169 = vld [vmem:[#allocation7 + $0x10c] sm:$0xf]
    %v170 = vld [vmem:[#allocation7 + $0x110] sm:$0xf]
    %v171 = vld [vmem:[#allocation7 + $0x114] sm:$0xf]
    %v172 = vld [vmem:[#allocation7 + $0x118] sm:$0xf]
    %v173 = vld [vmem:[#allocation7 + $0x11c] sm:$0xf]
    %v174 = vld [vmem:[#allocation7 + $0x120] sm:$0xf]
    %v175 = vld [vmem:[#allocation7 + $0x124] sm:$0xf]
    %v176 = vld [vmem:[#allocation7 + $0x128] sm:$0xf]
    %v177 = vld [vmem:[#allocation7 + $0x12c] sm:$0xf]
    %v178 = vld [vmem:[#allocation7 + $0x130] sm:$0xf]
    %v179 = vld [vmem:[#allocation7 + $0x134] sm:$0xf]
    %v180 = vld [vmem:[#allocation7 + $0x138] sm:$0xf]
    %v181 = vld [vmem:[#allocation7 + $0x13c] sm:$0xf]
    %v182 = vld [vmem:[#allocation7 + $0x140] sm:$0xf]
    %v183 = vld [vmem:[#allocation7 + $0x144] sm:$0xf]
    %v184 = vld [vmem:[#allocation7 + $0x148] sm:$0xf]
    %v185 = vld [vmem:[#allocation7 + $0x14c] sm:$0xf]
    %v186 = vld [vmem:[#allocation7 + $0x150] sm:$0xf]
    %v187 = vld [vmem:[#allocation7 + $0x154] sm:$0xf]
    %v188 = vld [vmem:[#allocation7 + $0x158] sm:$0xf]
    %v189 = vld [vmem:[#allocation7 + $0x15c] sm:$0xf]
    %v190 = vld [vmem:[#allocation7 + $0x160] sm:$0xf]
    %v191 = vld [vmem:[#allocation7 + $0x164] sm:$0xf]
    %v192 = vld [vmem:[#allocation7 + $0x168] sm:$0xf]
    %v193 = vld [vmem:[#allocation7 + $0x16c] sm:$0xf]
    %v194 = vld [vmem:[#allocation7 + $0x170] sm:$0xf]
    %v195 = vld [vmem:[#allocation7 + $0x174] sm:$0xf]
    %v196 = vld [vmem:[#allocation7 + $0x178] sm:$0xf]
    %v197 = vld [vmem:[#allocation7 + $0x17c] sm:$0xf]
    %v198 = vld [vmem:[#allocation5] sm:$0xf]
    %v199 = vld [vmem:[#allocation5 + $0x4] sm:$0xf]
    %v200 = vld [vmem:[#allocation8] sm:$0xf]
    %v201 = vld [vmem:[#allocation8 + $0x4] sm:$0xf]
    %v202 = vld [vmem:[#allocation8 + $0x8] sm:$0xf]
    %v203 = vld [vmem:[#allocation8 + $0xc] sm:$0xf]
    %v204 = vld [vmem:[#allocation8 + $0x10] sm:$0xf]
    %v205 = vld [vmem:[#allocation8 + $0x14] sm:$0xf]
    %v206 = vld [vmem:[#allocation8 + $0x18] sm:$0xf]
    %v207 = vld [vmem:[#allocation8 + $0x1c] sm:$0xf]
    %v208 = vld [vmem:[#allocation8 + $0x20] sm:$0xf]
    %v209 = vld [vmem:[#allocation8 + $0x24] sm:$0xf]
    %v210 = vld [vmem:[#allocation8 + $0x28] sm:$0xf]
    %v211 = vld [vmem:[#allocation8 + $0x2c] sm:$0xf]
    %v212 = vld [vmem:[#allocation8 + $0x30] sm:$0xf]
    %v213 = vld [vmem:[#allocation8 + $0x34] sm:$0xf]
    %v214 = vld [vmem:[#allocation8 + $0x38] sm:$0xf]
    %v215 = vld [vmem:[#allocation8 + $0x3c] sm:$0xf]
    %v218 = vunpack.c.l.b16 %v198
    %v219 = vunpack.c.l.b16 %v199
    %v220 = vpack.c.b16 %v219, %v218
    %v238 = vunpack.c.l.b16 %v200
    %v239 = vunpack.c.l.b16 %v201
    %v240 = vunpack.c.l.b16 %v202
    %v241 = vunpack.c.l.b16 %v203
    %v242 = vunpack.c.l.b16 %v204
    %v243 = vunpack.c.l.b16 %v205
    %v244 = vunpack.c.l.b16 %v206
    %v245 = vunpack.c.l.b16 %v207
    %v246 = vunpack.c.l.b16 %v208
    %v247 = vunpack.c.l.b16 %v209
    %v248 = vunpack.c.l.b16 %v210
    %v249 = vunpack.c.l.b16 %v211
    %v250 = vunpack.c.l.b16 %v212
    %v251 = vunpack.c.l.b16 %v213
    %v252 = vunpack.c.l.b16 %v214
    %v253 = vunpack.c.l.b16 %v215
    %v254 = vpack.c.b16 %v239, %v238
    %v255 = vpack.c.b16 %v241, %v240
    %v256 = vpack.c.b16 %v243, %v242
    %v257 = vpack.c.b16 %v245, %v244
    %v258 = vpack.c.b16 %v247, %v246
    %v259 = vpack.c.b16 %v249, %v248
    %v260 = vpack.c.b16 %v251, %v250
    %v261 = vpack.c.b16 %v253, %v252
    %270 = vmatprep.subr.bf16.mxu0 0
    %271 = vmatpush1.bf16.msra.mxu0 %v261
    %272 = vmatprep.subr.bf16.mxu0 0
    %273 = vmatpush1.bf16.msra.mxu0 %v260
    %274 = vmatprep.subr.bf16.mxu0 0
    %275 = vmatpush1.bf16.msra.mxu0 %v259
    %276 = vmatprep.subr.bf16.mxu0 0
    %277 = vmatpush1.bf16.msra.mxu0 %v258
    %278 = vmatprep.subr.bf16.mxu0 0
    %279 = vmatpush1.bf16.msra.mxu0 %v257
    %280 = vmatprep.subr.bf16.mxu0 0
    %281 = vmatpush1.bf16.msra.mxu0 %v256
    %282 = vmatprep.subr.bf16.mxu0 0
    %283 = vmatpush1.bf16.msra.mxu0 %v255
    %284 = vmatprep.subr.bf16.mxu0 0
    %285 = vmatpush1.bf16.msra.mxu0 %v254
    %286 = vmatprep.subr.bf16.mxu0 0
    %287 = vmatpush2.bf16.msra.mxu0 0
    %288 = vmatprep.subr.bf16.mxu0 0
    %289 = vmatpush2.bf16.msra.mxu0 0
    %290 = vmatprep.subr.bf16.mxu0 0
    %291 = vmatpush2.bf16.msra.mxu0 0
    %292 = vmatprep.subr.bf16.mxu0 0
    %293 = vmatpush2.bf16.msra.mxu0 0
    %294 = vmatprep.subr.bf16.mxu0 0
    %295 = vmatpush2.bf16.msra.mxu0 0
    %296 = vmatprep.subr.bf16.mxu0 0
    %297 = vmatpush2.bf16.msra.mxu0 0
    %298 = vmatprep.subr.bf16.mxu0 0
    %299 = vmatpush2.bf16.msra.mxu0 0
    %300 = vmatprep.subr.bf16.mxu0 0
    %301 = vmatpush2.bf16.msra.mxu0 0
    %302 = vmatprep.mubr.bf16.mxu0 0
    %303 = vmatmul.mubr.bf16.gmra.mxu0 %v220
    %v304 = vpop.f32.mrf.mxu0
    %v305 = vadd.f32 0.0, %v304
    %v306 = vpop.f32.mrf.mxu0
    %v307 = vpop.f32.mrf.mxu0
    %v308 = vadd.f32 0.0, %v307
    %v309 = vpop.f32.mrf.mxu0
    %310 = vdwg.mxu0
    %v317 = vunpack.c.l.b16 %v96
    %v318 = vunpack.c.h.b16 %v96
    %v319 = vunpack.c.l.b16 %v97
    %v320 = vunpack.c.h.b16 %v97
    %v321 = vunpack.c.l.b16 %v98
    %v322 = vunpack.c.h.b16 %v98
    %v323 = vunpack.c.l.b16 %v99
    %v324 = vunpack.c.h.b16 %v99
    %v325 = vunpack.c.l.b16 %v100
    %v326 = vunpack.c.h.b16 %v100
    %v327 = vunpack.c.l.b16 %v101
    %v328 = vunpack.c.h.b16 %v101
    %v329 = vpack.c.b16 %v323, %v317
    %v330 = vpack.c.b16 %v324, %v318
    %v331 = vpack.c.b16 %v325, %v319
    %v332 = vpack.c.b16 %v326, %v320
    %v333 = vpack.c.b16 %v327, %v321
    %v334 = vpack.c.b16 %v328, %v322
    %v437 = vunpack.c.l.b16 %v102
    %v438 = vunpack.c.l.b16 %v103
    %v439 = vunpack.c.l.b16 %v104
    %v440 = vunpack.c.l.b16 %v105
    %v441 = vunpack.c.l.b16 %v106
    %v442 = vunpack.c.l.b16 %v107
    %v443 = vunpack.c.l.b16 %v108
    %v444 = vunpack.c.l.b16 %v109
    %v445 = vunpack.c.l.b16 %v110
    %v446 = vunpack.c.l.b16 %v111
    %v447 = vunpack.c.l.b16 %v112
    %v448 = vunpack.c.l.b16 %v113
    %v449 = vunpack.c.l.b16 %v114
    %v450 = vunpack.c.l.b16 %v115
    %v451 = vunpack.c.l.b16 %v116
    %v452 = vunpack.c.l.b16 %v117
    %v453 = vunpack.c.l.b16 %v118
    %v454 = vunpack.c.l.b16 %v119
    %v455 = vunpack.c.l.b16 %v120
    %v456 = vunpack.c.l.b16 %v121
    %v457 = vunpack.c.l.b16 %v122
    %v458 = vunpack.c.l.b16 %v123
    %v459 = vunpack.c.l.b16 %v124
    %v460 = vunpack.c.l.b16 %v125
    %v461 = vunpack.c.l.b16 %v126
    %v462 = vunpack.c.l.b16 %v127
    %v463 = vunpack.c.l.b16 %v128
    %v464 = vunpack.c.l.b16 %v129
    %v465 = vunpack.c.l.b16 %v130
    %v466 = vunpack.c.l.b16 %v131
    %v467 = vunpack.c.l.b16 %v132
    %v468 = vunpack.c.l.b16 %v133
    %v469 = vunpack.c.l.b16 %v134
    %v470 = vunpack.c.l.b16 %v135
    %v471 = vunpack.c.l.b16 %v136
    %v472 = vunpack.c.l.b16 %v137
    %v473 = vunpack.c.l.b16 %v138
    %v474 = vunpack.c.l.b16 %v139
    %v475 = vunpack.c.l.b16 %v140
    %v476 = vunpack.c.l.b16 %v141
    %v477 = vunpack.c.l.b16 %v142
    %v478 = vunpack.c.l.b16 %v143
    %v479 = vunpack.c.l.b16 %v144
    %v480 = vunpack.c.l.b16 %v145
    %v481 = vunpack.c.l.b16 %v146
    %v482 = vunpack.c.l.b16 %v147
    %v483 = vunpack.c.l.b16 %v148
    %v484 = vunpack.c.l.b16 %v149
    %v485 = vunpack.c.l.b16 %v150
    %v486 = vunpack.c.l.b16 %v151
    %v487 = vunpack.c.l.b16 %v152
    %v488 = vunpack.c.l.b16 %v153
    %v489 = vunpack.c.l.b16 %v154
    %v490 = vunpack.c.l.b16 %v155
    %v491 = vunpack.c.l.b16 %v156
    %v492 = vunpack.c.l.b16 %v157
    %v493 = vunpack.c.l.b16 %v158
    %v494 = vunpack.c.l.b16 %v159
    %v495 = vunpack.c.l.b16 %v160
    %v496 = vunpack.c.l.b16 %v161
    %v497 = vunpack.c.l.b16 %v162
    %v498 = vunpack.c.l.b16 %v163
    %v499 = vunpack.c.l.b16 %v164
    %v500 = vunpack.c.l.b16 %v165
    %v501 = vunpack.c.l.b16 %v166
    %v502 = vunpack.c.l.b16 %v167
    %v503 = vunpack.c.l.b16 %v168
    %v504 = vunpack.c.l.b16 %v169
    %v505 = vunpack.c.l.b16 %v170
    %v506 = vunpack.c.l.b16 %v171
    %v507 = vunpack.c.l.b16 %v172
    %v508 = vunpack.c.l.b16 %v173
    %v509 = vunpack.c.l.b16 %v174
    %v510 = vunpack.c.l.b16 %v175
    %v511 = vunpack.c.l.b16 %v176
    %v512 = vunpack.c.l.b16 %v177
    %v513 = vunpack.c.l.b16 %v178
    %v514 = vunpack.c.l.b16 %v179
    %v515 = vunpack.c.l.b16 %v180
    %v516 = vunpack.c.l.b16 %v181
    %v517 = vunpack.c.l.b16 %v182
    %v518 = vunpack.c.l.b16 %v183
    %v519 = vunpack.c.l.b16 %v184
    %v520 = vunpack.c.l.b16 %v185
    %v521 = vunpack.c.l.b16 %v186
    %v522 = vunpack.c.l.b16 %v187
    %v523 = vunpack.c.l.b16 %v188
    %v524 = vunpack.c.l.b16 %v189
    %v525 = vunpack.c.l.b16 %v190
    %v526 = vunpack.c.l.b16 %v191
    %v527 = vunpack.c.l.b16 %v192
    %v528 = vunpack.c.l.b16 %v193
    %v529 = vunpack.c.l.b16 %v194
    %v530 = vunpack.c.l.b16 %v195
    %v531 = vunpack.c.l.b16 %v196
    %v532 = vunpack.c.l.b16 %v197
    %v533 = vpack.c.b16 %v438, %v437
    %v534 = vpack.c.b16 %v440, %v439
    %v535 = vpack.c.b16 %v442, %v441
    %v536 = vpack.c.b16 %v444, %v443
    %v537 = vpack.c.b16 %v446, %v445
    %v538 = vpack.c.b16 %v448, %v447
    %v539 = vpack.c.b16 %v450, %v449
    %v540 = vpack.c.b16 %v452, %v451
    %v541 = vpack.c.b16 %v454, %v453
    %v542 = vpack.c.b16 %v456, %v455
    %v543 = vpack.c.b16 %v458, %v457
    %v544 = vpack.c.b16 %v460, %v459
    %v545 = vpack.c.b16 %v462, %v461
    %v546 = vpack.c.b16 %v464, %v463
    %v547 = vpack.c.b16 %v466, %v465
    %v548 = vpack.c.b16 %v468, %v467
    %v549 = vpack.c.b16 %v470, %v469
    %v550 = vpack.c.b16 %v472, %v471
    %v551 = vpack.c.b16 %v474, %v473
    %v552 = vpack.c.b16 %v476, %v475
    %v553 = vpack.c.b16 %v478, %v477
    %v554 = vpack.c.b16 %v480, %v479
    %v555 = vpack.c.b16 %v482, %v481
    %v556 = vpack.c.b16 %v484, %v483
    %v557 = vpack.c.b16 %v486, %v485
    %v558 = vpack.c.b16 %v488, %v487
    %v559 = vpack.c.b16 %v490, %v489
    %v560 = vpack.c.b16 %v492, %v491
    %v561 = vpack.c.b16 %v494, %v493
    %v562 = vpack.c.b16 %v496, %v495
    %v563 = vpack.c.b16 %v498, %v497
    %v564 = vpack.c.b16 %v500, %v499
    %v565 = vpack.c.b16 %v502, %v501
    %v566 = vpack.c.b16 %v504, %v503
    %v567 = vpack.c.b16 %v506, %v505
    %v568 = vpack.c.b16 %v508, %v507
    %v569 = vpack.c.b16 %v510, %v509
    %v570 = vpack.c.b16 %v512, %v511
    %v571 = vpack.c.b16 %v514, %v513
    %v572 = vpack.c.b16 %v516, %v515
    %v573 = vpack.c.b16 %v518, %v517
    %v574 = vpack.c.b16 %v520, %v519
    %v575 = vpack.c.b16 %v522, %v521
    %v576 = vpack.c.b16 %v524, %v523
    %v577 = vpack.c.b16 %v526, %v525
    %v578 = vpack.c.b16 %v528, %v527
    %v579 = vpack.c.b16 %v530, %v529
    %v580 = vpack.c.b16 %v532, %v531
    %629 = vmatprep.subr.bf16.mxu0 0
    %630 = vmatpush1.bf16.msra.mxu0 %v540
    %631 = vmatprep.subr.bf16.mxu0 0
    %632 = vmatpush1.bf16.msra.mxu0 %v539
    %633 = vmatprep.subr.bf16.mxu0 0
    %634 = vmatpush1.bf16.msra.mxu0 %v538
    %635 = vmatprep.subr.bf16.mxu0 0
    %636 = vmatpush1.bf16.msra.mxu0 %v537
    %637 = vmatprep.subr.bf16.mxu0 0
    %638 = vmatpush1.bf16.msra.mxu0 %v536
    %639 = vmatprep.subr.bf16.mxu0 0
    %640 = vmatpush1.bf16.msra.mxu0 %v535
    %641 = vmatprep.subr.bf16.mxu0 0
    %642 = vmatpush1.bf16.msra.mxu0 %v534
    %643 = vmatprep.subr.bf16.mxu0 0
    %644 = vmatpush1.bf16.msra.mxu0 %v533
    %645 = vmatprep.subr.bf16.mxu0 0
    %646 = vmatpush2.bf16.msra.mxu0 %v548
    %647 = vmatprep.subr.bf16.mxu0 0
    %648 = vmatpush2.bf16.msra.mxu0 %v547
    %649 = vmatprep.subr.bf16.mxu0 0
    %650 = vmatpush2.bf16.msra.mxu0 %v546
    %651 = vmatprep.subr.bf16.mxu0 0
    %652 = vmatpush2.bf16.msra.mxu0 %v545
    %653 = vmatprep.subr.bf16.mxu0 0
    %654 = vmatpush2.bf16.msra.mxu0 %v544
    %655 = vmatprep.subr.bf16.mxu0 0
    %656 = vmatpush2.bf16.msra.mxu0 %v543
    %657 = vmatprep.subr.bf16.mxu0 0
    %658 = vmatpush2.bf16.msra.mxu0 %v542
    %659 = vmatprep.subr.bf16.mxu0 0
    %660 = vmatpush2.bf16.msra.mxu0 %v541
    %661 = vmatprep.mubr.bf16.mxu0 %v330
    %662 = vmatmul.mubr.bf16.gmra.mxu0 %v329
    %v663 = vpop.f32.mrf.mxu0
    %v664 = vadd.f32 %v305, %v663
    %v665 = vpop.f32.mrf.mxu0
    %v666 = vpop.f32.mrf.mxu0
    %v667 = vadd.f32 %v308, %v666
    %v668 = vpop.f32.mrf.mxu0
    %669 = vdwg.mxu0
    %670 = vmatprep.subr.bf16.mxu0 0
    %671 = vmatpush1.bf16.msra.mxu0 %v556
    %672 = vmatprep.subr.bf16.mxu0 0
    %673 = vmatpush1.bf16.msra.mxu0 %v555
    %674 = vmatprep.subr.bf16.mxu0 0
    %675 = vmatpush1.bf16.msra.mxu0 %v554
    %676 = vmatprep.subr.bf16.mxu0 0
    %677 = vmatpush1.bf16.msra.mxu0 %v553
    %678 = vmatprep.subr.bf16.mxu0 0
    %679 = vmatpush1.bf16.msra.mxu0 %v552
    %680 = vmatprep.subr.bf16.mxu0 0
    %681 = vmatpush1.bf16.msra.mxu0 %v551
    %682 = vmatprep.subr.bf16.mxu0 0
    %683 = vmatpush1.bf16.msra.mxu0 %v550
    %684 = vmatprep.subr.bf16.mxu0 0
    %685 = vmatpush1.bf16.msra.mxu0 %v549
    %686 = vmatprep.subr.bf16.mxu0 0
    %687 = vmatpush2.bf16.msra.mxu0 %v564
    %688 = vmatprep.subr.bf16.mxu0 0
    %689 = vmatpush2.bf16.msra.mxu0 %v563
    %690 = vmatprep.subr.bf16.mxu0 0
    %691 = vmatpush2.bf16.msra.mxu0 %v562
    %692 = vmatprep.subr.bf16.mxu0 0
    %693 = vmatpush2.bf16.msra.mxu0 %v561
    %694 = vmatprep.subr.bf16.mxu0 0
    %695 = vmatpush2.bf16.msra.mxu0 %v560
    %696 = vmatprep.subr.bf16.mxu0 0
    %697 = vmatpush2.bf16.msra.mxu0 %v559
    %698 = vmatprep.subr.bf16.mxu0 0
    %699 = vmatpush2.bf16.msra.mxu0 %v558
    %700 = vmatprep.subr.bf16.mxu0 0
    %701 = vmatpush2.bf16.msra.mxu0 %v557
    %702 = vmatprep.mubr.bf16.mxu0 %v332
    %703 = vmatmul.mubr.bf16.gmra.mxu0 %v331
    %v704 = vpop.f32.mrf.mxu0
    %v705 = vadd.f32 %v664, %v704
    %v706 = vpop.f32.mrf.mxu0
    %v707 = vpop.f32.mrf.mxu0
    %v708 = vadd.f32 %v667, %v707
    %v709 = vpop.f32.mrf.mxu0
    %710 = vdwg.mxu0
    %711 = vmatprep.subr.bf16.mxu0 0
    %712 = vmatpush1.bf16.msra.mxu0 %v572
    %713 = vmatprep.subr.bf16.mxu0 0
    %714 = vmatpush1.bf16.msra.mxu0 %v571
    %715 = vmatprep.subr.bf16.mxu0 0
    %716 = vmatpush1.bf16.msra.mxu0 %v570
    %717 = vmatprep.subr.bf16.mxu0 0
    %718 = vmatpush1.bf16.msra.mxu0 %v569
    %719 = vmatprep.subr.bf16.mxu0 0
    %720 = vmatpush1.bf16.msra.mxu0 %v568
    %721 = vmatprep.subr.bf16.mxu0 0
    %722 = vmatpush1.bf16.msra.mxu0 %v567
    %723 = vmatprep.subr.bf16.mxu0 0
    %724 = vmatpush1.bf16.msra.mxu0 %v566
    %725 = vmatprep.subr.bf16.mxu0 0
    %726 = vmatpush1.bf16.msra.mxu0 %v565
    %727 = vmatprep.subr.bf16.mxu0 0
    %728 = vmatpush2.bf16.msra.mxu0 %v580
    %729 = vmatprep.subr.bf16.mxu0 0
    %730 = vmatpush2.bf16.msra.mxu0 %v579
    %731 = vmatprep.subr.bf16.mxu0 0
    %732 = vmatpush2.bf16.msra.mxu0 %v578
    %733 = vmatprep.subr.bf16.mxu0 0
    %734 = vmatpush2.bf16.msra.mxu0 %v577
    %735 = vmatprep.subr.bf16.mxu0 0
    %736 = vmatpush2.bf16.msra.mxu0 %v576
    %737 = vmatprep.subr.bf16.mxu0 0
    %738 = vmatpush2.bf16.msra.mxu0 %v575
    %739 = vmatprep.subr.bf16.mxu0 0
    %740 = vmatpush2.bf16.msra.mxu0 %v574
    %741 = vmatprep.subr.bf16.mxu0 0
    %742 = vmatpush2.bf16.msra.mxu0 %v573
    %743 = vmatprep.mubr.bf16.mxu0 %v334
    %744 = vmatmul.mubr.bf16.gmra.mxu0 %v333
    %v745 = vpop.f32.mrf.mxu0
    %v746 = vadd.f32 %v705, %v745
    %v747 = vpop.f32.mrf.mxu0
    %v748 = vpop.f32.mrf.mxu0
    %v749 = vadd.f32 %v708, %v748
    %v750 = vpop.f32.mrf.mxu0
    %751 = vdwg.mxu0
    %v752 = vld [vmem:[%s4] sm:$0x1]
    %v754 = vlaneseq
    %v755 = vshrl.u32 %v754, 7
    %v756 = vsub.s32 0, %v755
    %v757 = vrot.slane %v752, %v756
    %v759 = vadd.f32 %v746, %v757
    %v760 = vadd.f32 %v749, %v757
    %v761 = vmax.f32 %v759, 0.0
    %v762 = vmax.f32 %v760, 0.0
    %v763 = vpack.c.bf16 %v762, %v761
    %v764 = vld [vmem:[#allocation10] sm:$0xf]
    %v765 = vld [vmem:[#allocation10 + $0x4] sm:$0xf]
    %v766 = vld [vmem:[#allocation10 + $0x8] sm:$0xf]
    %v767 = vld [vmem:[#allocation10 + $0xc] sm:$0xf]
    %v768 = vld [vmem:[#allocation10 + $0x10] sm:$0xf]
    %v769 = vld [vmem:[#allocation10 + $0x14] sm:$0xf]
    %v770 = vld [vmem:[#allocation10 + $0x18] sm:$0xf]
    %v771 = vld [vmem:[#allocation10 + $0x1c] sm:$0xf]
    %v772 = vld [vmem:[#allocation10 + $0x20] sm:$0xf]
    %v773 = vld [vmem:[#allocation10 + $0x24] sm:$0xf]
    %v774 = vld [vmem:[#allocation10 + $0x28] sm:$0xf]
    %v775 = vld [vmem:[#allocation10 + $0x2c] sm:$0xf]
    %v776 = vld [vmem:[#allocation10 + $0x30] sm:$0xf]
    %v777 = vld [vmem:[#allocation10 + $0x34] sm:$0xf]
    %v778 = vld [vmem:[#allocation10 + $0x38] sm:$0xf]
    %v779 = vld [vmem:[#allocation10 + $0x3c] sm:$0xf]
    %v780 = vld [vmem:[%s6] sm:$0x1]
    %v782 = vlaneseq
    %v783 = vshrl.u32 %v782, 7
    %v784 = vsub.s32 0, %v783
    %v785 = vrot.slane %v780, %v784
    %v803 = vunpack.c.l.b16 %v764
    %v804 = vunpack.c.l.b16 %v765
    %v805 = vunpack.c.l.b16 %v766
    %v806 = vunpack.c.l.b16 %v767
    %v807 = vunpack.c.l.b16 %v768
    %v808 = vunpack.c.l.b16 %v769
    %v809 = vunpack.c.l.b16 %v770
    %v810 = vunpack.c.l.b16 %v771
    %v811 = vunpack.c.l.b16 %v772
    %v812 = vunpack.c.l.b16 %v773
    %v813 = vunpack.c.l.b16 %v774
    %v814 = vunpack.c.l.b16 %v775
    %v815 = vunpack.c.l.b16 %v776
    %v816 = vunpack.c.l.b16 %v777
    %v817 = vunpack.c.l.b16 %v778
    %v818 = vunpack.c.l.b16 %v779
    %v819 = vpack.c.b16 %v804, %v803
    %v820 = vpack.c.b16 %v806, %v805
    %v821 = vpack.c.b16 %v808, %v807
    %v822 = vpack.c.b16 %v810, %v809
    %v823 = vpack.c.b16 %v812, %v811
    %v824 = vpack.c.b16 %v814, %v813
    %v825 = vpack.c.b16 %v816, %v815
    %v826 = vpack.c.b16 %v818, %v817
    %835 = vmatprep.subr.bf16.mxu0 0
    %836 = vmatpush1.bf16.msra.mxu0 %v826
    %837 = vmatprep.subr.bf16.mxu0 0
    %838 = vmatpush1.bf16.msra.mxu0 %v825
    %839 = vmatprep.subr.bf16.mxu0 0
    %840 = vmatpush1.bf16.msra.mxu0 %v824
    %841 = vmatprep.subr.bf16.mxu0 0
    %842 = vmatpush1.bf16.msra.mxu0 %v823
    %843 = vmatprep.subr.bf16.mxu0 0
    %844 = vmatpush1.bf16.msra.mxu0 %v822
    %845 = vmatprep.subr.bf16.mxu0 0
    %846 = vmatpush1.bf16.msra.mxu0 %v821
    %847 = vmatprep.subr.bf16.mxu0 0
    %848 = vmatpush1.bf16.msra.mxu0 %v820
    %849 = vmatprep.subr.bf16.mxu0 0
    %850 = vmatpush1.bf16.msra.mxu0 %v819
    %851 = vmatprep.subr.bf16.mxu0 0
    %852 = vmatpush2.bf16.msra.mxu0 0
    %853 = vmatprep.subr.bf16.mxu0 0
    %854 = vmatpush2.bf16.msra.mxu0 0
    %855 = vmatprep.subr.bf16.mxu0 0
    %856 = vmatpush2.bf16.msra.mxu0 0
    %857 = vmatprep.subr.bf16.mxu0 0
    %858 = vmatpush2.bf16.msra.mxu0 0
    %859 = vmatprep.subr.bf16.mxu0 0
    %860 = vmatpush2.bf16.msra.mxu0 0
    %861 = vmatprep.subr.bf16.mxu0 0
    %862 = vmatpush2.bf16.msra.mxu0 0
    %863 = vmatprep.subr.bf16.mxu0 0
    %864 = vmatpush2.bf16.msra.mxu0 0
    %865 = vmatprep.subr.bf16.mxu0 0
    %866 = vmatpush2.bf16.msra.mxu0 0
    %867 = vmatprep.mubr.bf16.mxu0 0
    %868 = vmatmul.mubr.bf16.gmra.mxu0 %v763
    %v869 = vpop.f32.mrf.mxu0
    %v870 = vadd.f32 %v785, %v869
    %v871 = vpop.f32.mrf.mxu0
    %v872 = vpop.f32.mrf.mxu0
    %v873 = vadd.f32 %v785, %v872
    %v874 = vpop.f32.mrf.mxu0
    %875 = vdwg.mxu0
    %v876 = vpack.c.bf16 %v873, %v870
    %v878 = vunpack.c.l.b16 %v876
    %v879 = vunpack.c.h.b16 %v876
    %v880 = vpack.c.b16 %v878, %v878
    %v881 = vpack.c.b16 %v879, %v879
    %884 = vst [vmem:[#allocation11] sm:$0xf] %v880
    %885 = vst [vmem:[#allocation11 + $0x4] sm:$0xf] %v881
    // Predicated region
    $region50: #{tpu_custom_call.1} parent=1 // pred_check
      _
    $region51: #{tpu_custom_call.1} parent=1 // pred_check_branch
      %887 = sbr.rel (0) target = $region53
    $region52: #{tpu_custom_call.1} parent=1 // pred_region
      %s889 = ssub.s32 128, 128
      %890 = vsyncadd [#allocation4], %s889
      %s891 = sshll.u32 [#allocation11], 4
      %s892 = int_to_ptr.vmem [resolvable:$true] %s891
      %897 = dma.vmem_to_hbm [thread:$0]  %s892, 128, %s7, [#allocation4], 64, 64, 4
    $region53: #{tpu_custom_call.1} parent=1 // pred_fallthru
      _
    // Predicated region
    $region54: #{tpu_custom_call.1} parent=1 // pred_check
      _
    $region55: #{tpu_custom_call.1} parent=1 // pred_check_branch
      %899 = sbr.rel (0) target = $region57
    $region56: #{tpu_custom_call.1} parent=1 // pred_region
      %900 = dma.done [#allocation4], 128
    $region57: #{tpu_custom_call.1} parent=1 // pred_fallthru
      _
    %901 = vsyncpa [#allocation3], 1
    %902 = vsyncpa [#allocation6], 1
    %903 = vsyncpa [#allocation9], 1
    %904 = vsyncpa [#allocation4], 1

</llo_original>
